<compile_context>
chip_gen: v7x
topology: tpu7x:2x2x1
jax: 0.10.0
libtpu: 0.0.40
codegen_flags: <defaults>
</compile_context>

<pallas_src>
import jax
import jax.numpy as jnp
from jax.experimental import pallas as pl
from jax.experimental.pallas import tpu as pltpu

H1, H2 = 64, 32  # hidden widths of the module


def _round_up(x, m):
    return ((x + m - 1) // m) * m


def mlp_kernel(x_ref, w1_ref, b1_ref, w2_ref, b2_ref, w3_ref, b3_ref, o_ref):
    # Feature-major: batch is on the 128-lane (minor) axis of every operand.
    x = x_ref[...]                                                     # (n_in, tb)
    h1 = jnp.dot(w1_ref[...], x, preferred_element_type=jnp.float32)   # (64, tb)
    h1 = jnp.maximum(h1 + b1_ref[...], 0.0)                            # ReLU
    h2 = jnp.dot(w2_ref[...], h1, preferred_element_type=jnp.float32)  # (32, tb)
    h2 = jnp.maximum(h2 + b2_ref[...], 0.0)                            # ReLU
    # Layer 3 (32 -> 1): VPU multiply + sublane reduce (keeps the MXU out of a
    # 1-useful-lane systolic pass).  w3_ref is the (32, 1) column of weights.
    z = jnp.sum(h2 * w3_ref[...], axis=0, keepdims=True) + b3_ref[0, 0]  # (1, tb)
    o_ref[...] = jax.nn.sigmoid(z)


def network_forward(x, params, *, tb=2048):
    """x: (B, n_entries) float32; params in PyTorch nn.Linear layout
    (W: (out, in), b: (out,)).  Returns (B, 1) float32, matching Network.forward."""
    w1, b1, w2, b2, w3, b3 = params
    B, n_in = x.shape
    assert w1.shape == (H1, n_in) and w2.shape == (H2, H1) and w3.shape == (1, H2)

    # Cap the batch tile (multiple of 128 so the lane axis is dense), pad batch.
    tb = max(128, min(_round_up(tb, 128), 8192))
    tb = min(tb, _round_up(B, 128))
    Bp = _round_up(B, tb)
    grid = (Bp // tb,)

    # One-time layout plumbing in the wrapper (outside the kernel).
    x_t = jnp.pad(x.astype(jnp.float32).T, ((0, 0), (0, Bp - B)))      # (n_in, Bp)
    b1c = b1.reshape(H1, 1).astype(jnp.float32)                        # (64, 1)
    b2c = b2.reshape(H2, 1).astype(jnp.float32)                        # (32, 1)
    w3c = w3.astype(jnp.float32).T                                     # (32, 1)
    b3s = b3.reshape(1, 1).astype(jnp.float32)                         # (1, 1) -> SMEM

    flops = 2 * Bp * (n_in * H1 + H1 * H2 + H2)
    bytes_accessed = 4 * (x_t.size + Bp
                          + w1.size + w2.size + w3.size
                          + b1.size + b2.size + b3.size)

    out_t = pl.pallas_call(
        mlp_kernel,
        out_shape=jax.ShapeDtypeStruct((1, Bp), jnp.float32),
        grid=grid,
        in_specs=[
            pl.BlockSpec((n_in, tb), lambda i: (0, i)),                # x (feature-major)
            pl.BlockSpec((H1, n_in), lambda i: (0, 0)),                # W1 (out, in)
            pl.BlockSpec((H1, 1), lambda i: (0, 0)),                   # b1 column
            pl.BlockSpec((H2, H1), lambda i: (0, 0)),                  # W2 (out, in)
            pl.BlockSpec((H2, 1), lambda i: (0, 0)),                   # b2 column
            pl.BlockSpec((H2, 1), lambda i: (0, 0)),                   # w3 column
            pl.BlockSpec(memory_space=pltpu.MemorySpace.SMEM),         # b3 scalar
        ],
        out_specs=pl.BlockSpec((1, tb), lambda i: (0, i)),             # lane-dense output
        compiler_params=pltpu.CompilerParams(
            dimension_semantics=("parallel",),
            vmem_limit_bytes=32 * 1024 * 1024,
        ),
        cost_estimate=pl.CostEstimate(
            flops=flops, transcendentals=Bp, bytes_accessed=bytes_accessed),
    )(x_t, w1.astype(jnp.float32), b1c, w2.astype(jnp.float32), b2c, w3c, b3s)

    # Back to the PyTorch output layout (B, 1); drop batch padding.
    return out_t[0, :B].reshape(B, 1)


def init_params(key, n_entries):
    """Deterministic init with PyTorch nn.Linear shapes: W (out, in), b (out,)."""
    ks = jax.random.split(key, 6)

    def lin(kw, kb, fan_in, fan_out):
        lim = 1.0 / (fan_in ** 0.5)
        w = jax.random.uniform(kw, (fan_out, fan_in), jnp.float32, -lim, lim)
        b = jax.random.uniform(kb, (fan_out,), jnp.float32, -lim, lim)
        return w, b

    w1, b1 = lin(ks[0], ks[1], n_entries, H1)
    w2, b2 = lin(ks[2], ks[3], H1, H2)
    w3, b3 = lin(ks[4], ks[5], H2, 1)
    return (w1, b1, w2, b2, w3, b3)


def network_ref(x, params):
    """Pure-JAX reference (PyTorch semantics: y = x @ W.T + b)."""
    w1, b1, w2, b2, w3, b3 = params
    h1 = jnp.maximum(x @ w1.T + b1, 0.0)
    h2 = jnp.maximum(h1 @ w2.T + b2, 0.0)
    return jax.nn.sigmoid(h2 @ w3.T + b3)


if __name__ == "__main__":
    key = jax.random.PRNGKey(0)
    n_entries = 14  # adult dataset feature count (X_train.shape[1])

    kx, kp = jax.random.split(key)
    params = init_params(kp, n_entries)

    # Small batch: pads up to one 128-lane tile, grid=(1,).
    x_small = jax.random.normal(kx, (8, n_entries), jnp.float32)
    y_small = jax.block_until_ready(network_forward(x_small, params, tb=128))
    assert y_small.shape == (8, 1)
    assert jnp.allclose(y_small, network_ref(x_small, params), atol=1e-5, rtol=1e-5), \
        "mismatch vs reference (small batch)"

    # Batch that exercises zero-padding and a multi-step grid: 300 -> 384, grid=(3,).
    x_big = jax.random.normal(kx, (300, n_entries), jnp.float32)
    y_big = jax.block_until_ready(network_forward(x_big, params, tb=128))
    assert y_big.shape == (300, 1)
    assert jnp.allclose(y_big, network_ref(x_big, params), atol=1e-5, rtol=1e-5), \
        "mismatch vs reference (padded multi-tile batch)"

    print("KERNEL_OK")
</pallas_src>

<mosaic_0001>
module attributes {stable_mosaic.version = 11 : i64} {
  func.func @mlp_kernel(%arg0: i32, %arg1: memref<14x128xf32, #tpu.memory_space<vmem>>, %arg2: memref<64x14xf32, #tpu.memory_space<vmem>>, %arg3: memref<64x1xf32, #tpu.memory_space<vmem>>, %arg4: memref<32x64xf32, #tpu.memory_space<vmem>>, %arg5: memref<32x1xf32, #tpu.memory_space<vmem>>, %arg6: memref<32x1xf32, #tpu.memory_space<vmem>>, %arg7: memref<1x1xf32, #tpu.memory_space<smem>>, %arg8: memref<1x128xf32, #tpu.memory_space<vmem>>) attributes {dimension_semantics = [#tpu.dimension_semantics<parallel>], iteration_bounds = array<i64: 1>, scalar_prefetch = 0 : i64, scratch_operands = 0 : i64, tpu.core_type = #tpu.core_type<tc>, window_params = [{transform_indices = @transform_0, window_bounds = array<i64: 14, 128>}, {pipeline_mode = #tpu.pipeline_mode<synchronous>, transform_indices = @transform_1, window_bounds = array<i64: 64, 14>}, {pipeline_mode = #tpu.pipeline_mode<synchronous>, transform_indices = @transform_2, window_bounds = array<i64: 64, 1>}, {pipeline_mode = #tpu.pipeline_mode<synchronous>, transform_indices = @transform_3, window_bounds = array<i64: 32, 64>}, {pipeline_mode = #tpu.pipeline_mode<synchronous>, transform_indices = @transform_4, window_bounds = array<i64: 32, 1>}, {pipeline_mode = #tpu.pipeline_mode<synchronous>, transform_indices = @transform_5, window_bounds = array<i64: 32, 1>}, {transform_indices = @transform_6, window_bounds = array<i64: 1, 1>}, {transform_indices = @transform_7, window_bounds = array<i64: 1, 128>}]} {
    %c0 = arith.constant 0 : index
    %c0_0 = arith.constant 0 : index
    %0 = vector.load %arg1[%c0, %c0_0] : memref<14x128xf32, #tpu.memory_space<vmem>>, vector<14x128xf32>
    %c0_1 = arith.constant 0 : index
    %c0_2 = arith.constant 0 : index
    %1 = vector.load %arg2[%c0_1, %c0_2] : memref<64x14xf32, #tpu.memory_space<vmem>>, vector<64x14xf32>
    %cst = arith.constant dense<0.000000e+00> : vector<64x128xf32>
    %2 = tpu.matmul %1, %0, %cst {dimension_numbers = #tpu.dot_dimension_numbers<[1], [0], [0], [1], [0, 0, 1, 1], [], []>} : vector<64x14xf32>, vector<14x128xf32>, vector<64x128xf32> -> vector<64x128xf32>
    %c0_3 = arith.constant 0 : index
    %c0_4 = arith.constant 0 : index
    %3 = vector.load %arg3[%c0_3, %c0_4] : memref<64x1xf32, #tpu.memory_space<vmem>>, vector<64x1xf32>
    %4 = vector.broadcast %3 : vector<64x1xf32> to vector<64x128xf32>
    %5 = arith.addf %2, %4 : vector<64x128xf32>
    %cst_5 = arith.constant 0.000000e+00 : f32
    %6 = vector.broadcast %cst_5 : f32 to vector<64x128xf32>
    %7 = arith.maximumf %5, %6 : vector<64x128xf32>
    %c0_6 = arith.constant 0 : index
    %c0_7 = arith.constant 0 : index
    %8 = vector.load %arg4[%c0_6, %c0_7] : memref<32x64xf32, #tpu.memory_space<vmem>>, vector<32x64xf32>
    %cst_8 = arith.constant dense<0.000000e+00> : vector<32x128xf32>
    %9 = tpu.matmul %8, %7, %cst_8 {dimension_numbers = #tpu.dot_dimension_numbers<[1], [0], [0], [1], [0, 0, 1, 1], [], []>} : vector<32x64xf32>, vector<64x128xf32>, vector<32x128xf32> -> vector<32x128xf32>
    %c0_9 = arith.constant 0 : index
    %c0_10 = arith.constant 0 : index
    %10 = vector.load %arg5[%c0_9, %c0_10] : memref<32x1xf32, #tpu.memory_space<vmem>>, vector<32x1xf32>
    %11 = vector.broadcast %10 : vector<32x1xf32> to vector<32x128xf32>
    %12 = arith.addf %9, %11 : vector<32x128xf32>
    %cst_11 = arith.constant 0.000000e+00 : f32
    %13 = vector.broadcast %cst_11 : f32 to vector<32x128xf32>
    %14 = arith.maximumf %12, %13 : vector<32x128xf32>
    %c0_12 = arith.constant 0 : index
    %c0_13 = arith.constant 0 : index
    %15 = vector.load %arg6[%c0_12, %c0_13] : memref<32x1xf32, #tpu.memory_space<vmem>>, vector<32x1xf32>
    %16 = vector.broadcast %15 : vector<32x1xf32> to vector<32x128xf32>
    %17 = arith.mulf %14, %16 : vector<32x128xf32>
    %cst_14 = arith.constant dense<0.000000e+00> : vector<128xf32>
    %18 = vector.multi_reduction <add>, %17, %cst_14 [0] : vector<32x128xf32> to vector<128xf32>
    %19 = vector.shape_cast %18 : vector<128xf32> to vector<1x128xf32>
    %c0_15 = arith.constant 0 : index
    %c0_16 = arith.constant 0 : index
    %20 = memref.load %arg7[%c0_15, %c0_16] : memref<1x1xf32, #tpu.memory_space<smem>>
    %21 = vector.broadcast %20 : f32 to vector<1x128xf32>
    %22 = arith.addf %19, %21 : vector<1x128xf32>
    %23 = arith.negf %22 : vector<1x128xf32>
    %24 = math.exp %23 : vector<1x128xf32>
    %cst_17 = arith.constant 1.000000e+00 : f32
    %25 = vector.broadcast %cst_17 : f32 to vector<1x128xf32>
    %26 = arith.addf %25, %24 : vector<1x128xf32>
    %27 = arith.divf %25, %26 : vector<1x128xf32>
    %c0_18 = arith.constant 0 : index
    %c0_19 = arith.constant 0 : index
    %28 = vector.load %arg8[%c0_18, %c0_19] : memref<1x128xf32, #tpu.memory_space<vmem>>, vector<1x128xf32>
    tpu.vector_store %arg8[%c0_18, %c0_19], %27 {strides = array<i32>} : memref<1x128xf32, #tpu.memory_space<vmem>>, vector<1x128xf32>,
    return
  }
  func.func @transform_0(%arg0: i32) -> (i32, i32) {
    %c0_i32 = arith.constant 0 : i32
    %c0_i32_0 = arith.constant 0 : i32
    return %c0_i32, %arg0 : i32, i32
  }
  func.func @transform_1(%arg0: i32) -> (i32, i32) {
    %c0_i32 = arith.constant 0 : i32
    %c0_i32_0 = arith.constant 0 : i32
    %c0_i32_1 = arith.constant 0 : i32
    return %c0_i32, %c0_i32_0 : i32, i32
  }
  func.func @transform_2(%arg0: i32) -> (i32, i32) {
    %c0_i32 = arith.constant 0 : i32
    %c0_i32_0 = arith.constant 0 : i32
    %c0_i32_1 = arith.constant 0 : i32
    return %c0_i32, %c0_i32_0 : i32, i32
  }
  func.func @transform_3(%arg0: i32) -> (i32, i32) {
    %c0_i32 = arith.constant 0 : i32
    %c0_i32_0 = arith.constant 0 : i32
    %c0_i32_1 = arith.constant 0 : i32
    return %c0_i32, %c0_i32_0 : i32, i32
  }
  func.func @transform_4(%arg0: i32) -> (i32, i32) {
    %c0_i32 = arith.constant 0 : i32
    %c0_i32_0 = arith.constant 0 : i32
    %c0_i32_1 = arith.constant 0 : i32
    return %c0_i32, %c0_i32_0 : i32, i32
  }
  func.func @transform_5(%arg0: i32) -> (i32, i32) {
    %c0_i32 = arith.constant 0 : i32
    %c0_i32_0 = arith.constant 0 : i32
    %c0_i32_1 = arith.constant 0 : i32
    return %c0_i32, %c0_i32_0 : i32, i32
  }
  func.func @transform_6(%arg0: i32) -> (i32, i32) {
    %c0_i32 = arith.constant 0 : i32
    %c0_i32_0 = arith.constant 0 : i32
    %c0_i32_1 = arith.constant 0 : i32
    return %c0_i32, %c0_i32_0 : i32, i32
  }
  func.func @transform_7(%arg0: i32) -> (i32, i32) {
    %c0_i32 = arith.constant 0 : i32
    %c0_i32_0 = arith.constant 0 : i32
    return %c0_i32, %arg0 : i32, i32
  }
}

</mosaic_0001>

<llo_original>
// kernel: tpu_custom_call.1
$region0: #{tpu_custom_call.1}
  #allocation0 [shape = 'u32[]', space=smem, size = 0x4, offset = 0x4, fixed_abs, tag = 'smem constant byte address 0x4 - core index']
  #allocation1 [shape = 'u32[144,128]{1,0:T(1,128)}', space=vmem, size = 0x12000, scoped, tag = 'internal scratch']
  #allocation2 [shape = 'f32[1,1]{1,0:T(1,128)S(6)}', space=smem, size = 0x200, scoped, tag = 'scoped memory for tpu_custom_call.1']
  %s0 = inlined_call_operand.vmem [shape: f32[14,128], index: 0, kind: input, shape index: {}]
  %s1 = inlined_call_operand.vmem [shape: f32[64,14], index: 1, kind: input, shape index: {}]
  %s2 = inlined_call_operand.vmem [shape: f32[64,1], index: 2, kind: input, shape index: {}]
  %s3 = inlined_call_operand.vmem [shape: f32[32,64], index: 3, kind: input, shape index: {}]
  %s4 = inlined_call_operand.vmem [shape: f32[32,1], index: 4, kind: input, shape index: {}]
  %s5 = inlined_call_operand.vmem [shape: f32[32,1], index: 5, kind: input, shape index: {}]
  %s6 = inlined_call_operand.<no memory space> [shape: f32[1,1], index: 6, kind: input, shape index: {}]
  %s7 = inlined_call_operand.hbm [shape: f32[1,128], index: 7, kind: output, shape index: {}]
  %s8 = sld [smem:[#allocation0]]
  $region38: #{tpu_custom_call.1} parent=0
    _
  %s10 = ssub.s32 1, %s8
  %s11 = scalar_select 0, %s10, %s8
  %12 = sst [smem:[#allocation2]] %s6
  $region1: #{tpu_custom_call.1} parent=0
    #allocation3 [shape = 'u8[512]{0}', space=vmem, size = 0x400, scoped, tag = 'output window, operand 0, single buffered']
    #allocation4 [shape = 's32[1]{0}', space=sflag, size = 0x4, scoped, tag = 'scoped memory for tpu_custom_call.1']
    %13 = vsyncpa [#allocation4], 0
    // Predicated region
    $region2: #{tpu_custom_call.1} parent=1 // pred_check
      _
    $region3: #{tpu_custom_call.1} parent=1 // pred_check_branch
      %15 = sbr.rel (0) target = $region5
    $region4: #{tpu_custom_call.1} parent=1 // pred_region
      _
    $region5: #{tpu_custom_call.1} parent=1 // pred_fallthru
      _
    // Predicated region
    $region6: #{tpu_custom_call.1} parent=1 // pred_check
      _
    $region7: #{tpu_custom_call.1} parent=1 // pred_check_branch
      %17 = sbr.rel (0) target = $region9
    $region8: #{tpu_custom_call.1} parent=1 // pred_region
      _
    $region9: #{tpu_custom_call.1} parent=1 // pred_fallthru
      _
    // Predicated region
    $region10: #{tpu_custom_call.1} parent=1 // pred_check
      _
    $region11: #{tpu_custom_call.1} parent=1 // pred_check_branch
      %19 = sbr.rel (0) target = $region13
    $region12: #{tpu_custom_call.1} parent=1 // pred_region
      _
    $region13: #{tpu_custom_call.1} parent=1 // pred_fallthru
      _
    // Predicated region
    $region14: #{tpu_custom_call.1} parent=1 // pred_check
      _
    $region15: #{tpu_custom_call.1} parent=1 // pred_check_branch
      %21 = sbr.rel (0) target = $region17
    $region16: #{tpu_custom_call.1} parent=1 // pred_region
      _
    $region17: #{tpu_custom_call.1} parent=1 // pred_fallthru
      _
    // Predicated region
    $region18: #{tpu_custom_call.1} parent=1 // pred_check
      _
    $region19: #{tpu_custom_call.1} parent=1 // pred_check_branch
      %23 = sbr.rel (0) target = $region21
    $region20: #{tpu_custom_call.1} parent=1 // pred_region
      _
    $region21: #{tpu_custom_call.1} parent=1 // pred_fallthru
      _
    // Predicated region
    $region22: #{tpu_custom_call.1} parent=1 // pred_check
      _
    $region23: #{tpu_custom_call.1} parent=1 // pred_check_branch
      %25 = sbr.rel (0) target = $region25
    $region24: #{tpu_custom_call.1} parent=1 // pred_region
      _
    $region25: #{tpu_custom_call.1} parent=1 // pred_fallthru
      _
    // Predicated region
    $region26: #{tpu_custom_call.1} parent=1 // pred_check
      _
    $region27: #{tpu_custom_call.1} parent=1 // pred_check_branch
      %27 = sbr.rel (0) target = $region29
    $region28: #{tpu_custom_call.1} parent=1 // pred_region
      _
    $region29: #{tpu_custom_call.1} parent=1 // pred_fallthru
      _
    %v28 = vld [vmem:[%s0] sm:$0xff]
    %v29 = vld [vmem:[%s0 + $0x8] sm:$0x3f]
    %v30 = vld [vmem:[%s1] sm:$0xff]
    %v31 = vld [vmem:[%s1 + $0x8] sm:$0xff]
    %v32 = vld [vmem:[%s1 + $0x10] sm:$0xff]
    %v33 = vld [vmem:[%s1 + $0x18] sm:$0xff]
    %v34 = vld [vmem:[%s1 + $0x20] sm:$0xff]
    %v35 = vld [vmem:[%s1 + $0x28] sm:$0xff]
    %v36 = vld [vmem:[%s1 + $0x30] sm:$0xff]
    %v37 = vld [vmem:[%s1 + $0x38] sm:$0xff]
    %v38 = vld [vmem:[%s2] sm:$0xff]
    %v39 = vld [vmem:[%s2 + $0x8] sm:$0xff]
    %v40 = vld [vmem:[%s2 + $0x10] sm:$0xff]
    %v41 = vld [vmem:[%s2 + $0x18] sm:$0xff]
    %v42 = vld [vmem:[%s2 + $0x20] sm:$0xff]
    %v43 = vld [vmem:[%s2 + $0x28] sm:$0xff]
    %v44 = vld [vmem:[%s2 + $0x30] sm:$0xff]
    %v45 = vld [vmem:[%s2 + $0x38] sm:$0xff]
    %47 = vset.pattern.permute.xlu0 0
    %48 = vperm.xlu0 %47, %v38
    %v49 = vpop.permute.xlu0 %48
    %52 = vset.pattern.permute.xlu0 0
    %53 = vperm.xlu0 %52, %v39
    %v54 = vpop.permute.xlu0 %53
    %57 = vset.pattern.permute.xlu0 0
    %58 = vperm.xlu0 %57, %v40
    %v59 = vpop.permute.xlu0 %58
    %62 = vset.pattern.permute.xlu0 0
    %63 = vperm.xlu0 %62, %v41
    %v64 = vpop.permute.xlu0 %63
    %67 = vset.pattern.permute.xlu0 0
    %68 = vperm.xlu0 %67, %v42
    %v69 = vpop.permute.xlu0 %68
    %72 = vset.pattern.permute.xlu0 0
    %73 = vperm.xlu0 %72, %v43
    %v74 = vpop.permute.xlu0 %73
    %77 = vset.pattern.permute.xlu0 0
    %78 = vperm.xlu0 %77, %v44
    %v79 = vpop.permute.xlu0 %78
    %82 = vset.pattern.permute.xlu0 0
    %83 = vperm.xlu0 %82, %v45
    %v84 = vpop.permute.xlu0 %83
    %vm86 = vcmask 113664
    %v88 = vsel %vm86, %v30, 0
    %v91 = vsel %vm86, %v31, 0
    %v94 = vsel %vm86, %v32, 0
    %v97 = vsel %vm86, %v33, 0
    %v100 = vsel %vm86, %v34, 0
    %v103 = vsel %vm86, %v35, 0
    %v106 = vsel %vm86, %v36, 0
    %v109 = vsel %vm86, %v37, 0
    %vm111 = vcmask 1045504
    %v113 = vsel %vm111, %v29, 0
    %115 = vmatprep.subr.mxu0 0.0
    %116 = vmatpush1.msra.mxu0 %v28
    %117 = vmatprep.subr.mxu0 0.0
    %118 = vmatpush1.msra.mxu0 %v113
    %119 = vmatprep.subr.mxu0 0.0
    %120 = vmatpush1.msra.mxu0 0.0
    %121 = vmatprep.subr.mxu0 0.0
    %122 = vmatpush1.msra.mxu0 0.0
    %123 = vmatprep.subr.mxu0 0.0
    %124 = vmatpush1.msra.mxu0 0.0
    %125 = vmatprep.subr.mxu0 0.0
    %126 = vmatpush1.msra.mxu0 0.0
    %127 = vmatprep.subr.mxu0 0.0
    %128 = vmatpush1.msra.mxu0 0.0
    %129 = vmatprep.subr.mxu0 0.0
    %130 = vmatpush1.msra.mxu0 0.0
    %131 = vmatprep.subr.mxu0 0.0
    %132 = vmatpush1.msra.mxu0 0.0
    %133 = vmatprep.subr.mxu0 0.0
    %134 = vmatpush1.msra.mxu0 0.0
    %135 = vmatprep.subr.mxu0 0.0
    %136 = vmatpush1.msra.mxu0 0.0
    %137 = vmatprep.subr.mxu0 0.0
    %138 = vmatpush1.msra.mxu0 0.0
    %139 = vmatprep.subr.mxu0 0.0
    %140 = vmatpush1.msra.mxu0 0.0
    %141 = vmatprep.subr.mxu0 0.0
    %142 = vmatpush1.msra.mxu0 0.0
    %143 = vmatprep.subr.mxu0 0.0
    %144 = vmatpush1.msra.mxu0 0.0
    %145 = vmatprep.subr.mxu0 0.0
    %146 = vmatpush1.msra.mxu0 0.0
    %147 = vmatprep.subr.mxu0 0.0
    %148 = vmatpush1.msra.mxu0 0.0
    %149 = vmatprep.subr.mxu0 0.0
    %150 = vmatpush1.msra.mxu0 0.0
    %151 = vmatprep.subr.mxu0 0.0
    %152 = vmatpush1.msra.mxu0 0.0
    %153 = vmatprep.subr.mxu0 0.0
    %154 = vmatpush1.msra.mxu0 0.0
    %155 = vmatprep.subr.mxu0 0.0
    %156 = vmatpush1.msra.mxu0 0.0
    %157 = vmatprep.subr.mxu0 0.0
    %158 = vmatpush1.msra.mxu0 0.0
    %159 = vmatprep.subr.mxu0 0.0
    %160 = vmatpush1.msra.mxu0 0.0
    %161 = vmatprep.subr.mxu0 0.0
    %162 = vmatpush1.msra.mxu0 0.0
    %163 = vmatprep.subr.mxu0 0.0
    %164 = vmatpush1.msra.mxu0 0.0
    %165 = vmatprep.subr.mxu0 0.0
    %166 = vmatpush1.msra.mxu0 0.0
    %167 = vmatprep.subr.mxu0 0.0
    %168 = vmatpush1.msra.mxu0 0.0
    %169 = vmatprep.subr.mxu0 0.0
    %170 = vmatpush1.msra.mxu0 0.0
    %171 = vmatprep.subr.mxu0 0.0
    %172 = vmatpush1.msra.mxu0 0.0
    %173 = vmatprep.subr.mxu0 0.0
    %174 = vmatpush1.msra.mxu0 0.0
    %175 = vmatprep.subr.mxu0 0.0
    %176 = vmatpush1.msra.mxu0 0.0
    %177 = vmatprep.subr.mxu0 0.0
    %178 = vmatpush1.msra.mxu0 0.0
    %179 = vmatprep.mubr.f32.mxu0 0.0
    %180 = vmatmul.mubr.f32.gmra.mrb[0].mxu0 %v88
    %v181 = vpop.f32.mrb[0].mxu0
    %v182 = vadd.f32 %v49, %v181
    %v183 = vpop.f32.mrb[0].mxu0
    %184 = vmatprep.mubr.f32.mxu0 0.0
    %185 = vmatmul.mubr.f32.gmra.mrb[0].mxu0 %v91
    %v186 = vpop.f32.mrb[0].mxu0
    %v187 = vadd.f32 %v54, %v186
    %v188 = vpop.f32.mrb[0].mxu0
    %189 = vmatprep.mubr.f32.mxu0 0.0
    %190 = vmatmul.mubr.f32.gmra.mrb[0].mxu0 %v94
    %v191 = vpop.f32.mrb[0].mxu0
    %v192 = vadd.f32 %v59, %v191
    %v193 = vpop.f32.mrb[0].mxu0
    %194 = vmatprep.mubr.f32.mxu0 0.0
    %195 = vmatmul.mubr.f32.gmra.mrb[0].mxu0 %v97
    %v196 = vpop.f32.mrb[0].mxu0
    %v197 = vadd.f32 %v64, %v196
    %v198 = vpop.f32.mrb[0].mxu0
    %199 = vmatprep.mubr.f32.mxu0 0.0
    %200 = vmatmul.mubr.f32.gmra.mrb[0].mxu0 %v100
    %v201 = vpop.f32.mrb[0].mxu0
    %v202 = vadd.f32 %v69, %v201
    %v203 = vpop.f32.mrb[0].mxu0
    %204 = vmatprep.mubr.f32.mxu0 0.0
    %205 = vmatmul.mubr.f32.gmra.mrb[0].mxu0 %v103
    %v206 = vpop.f32.mrb[0].mxu0
    %v207 = vadd.f32 %v74, %v206
    %v208 = vpop.f32.mrb[0].mxu0
    %209 = vmatprep.mubr.f32.mxu0 0.0
    %210 = vmatmul.mubr.f32.gmra.mrb[0].mxu0 %v106
    %v211 = vpop.f32.mrb[0].mxu0
    %v212 = vadd.f32 %v79, %v211
    %v213 = vpop.f32.mrb[0].mxu0
    %214 = vmatprep.mubr.f32.mxu0 0.0
    %215 = vmatmul.mubr.f32.gmra.mrb[0].mxu0 %v109
    %v216 = vpop.f32.mrb[0].mxu0
    %v217 = vadd.f32 %v84, %v216
    %v218 = vpop.f32.mrb[0].mxu0
    %219 = vdwg.mxu0
    %v220 = vmax.f32 %v182, 0.0
    %v221 = vmax.f32 %v187, 0.0
    %v222 = vmax.f32 %v192, 0.0
    %v223 = vmax.f32 %v197, 0.0
    %v224 = vmax.f32 %v202, 0.0
    %v225 = vmax.f32 %v207, 0.0
    %v226 = vmax.f32 %v212, 0.0
    %v227 = vmax.f32 %v217, 0.0
    %v228 = vld [vmem:[%s3] sm:$0xff]
    %v229 = vld [vmem:[%s3 + $0x8] sm:$0xff]
    %v230 = vld [vmem:[%s3 + $0x10] sm:$0xff]
    %v231 = vld [vmem:[%s3 + $0x18] sm:$0xff]
    %v232 = vld [vmem:[%s4] sm:$0xff]
    %v233 = vld [vmem:[%s4 + $0x8] sm:$0xff]
    %v234 = vld [vmem:[%s4 + $0x10] sm:$0xff]
    %v235 = vld [vmem:[%s4 + $0x18] sm:$0xff]
    %237 = vset.pattern.permute.xlu0 0
    %238 = vperm.xlu0 %237, %v232
    %v239 = vpop.permute.xlu0 %238
    %242 = vset.pattern.permute.xlu0 0
    %243 = vperm.xlu0 %242, %v233
    %v244 = vpop.permute.xlu0 %243
    %247 = vset.pattern.permute.xlu0 0
    %248 = vperm.xlu0 %247, %v234
    %v249 = vpop.permute.xlu0 %248
    %252 = vset.pattern.permute.xlu0 0
    %253 = vperm.xlu0 %252, %v235
    %v254 = vpop.permute.xlu0 %253
    %vm256 = vcmask 523264
    %v258 = vsel %vm256, %v228, 0
    %v261 = vsel %vm256, %v229, 0
    %v264 = vsel %vm256, %v230, 0
    %v267 = vsel %vm256, %v231, 0
    %269 = vmatprep.subr.mxu0 0.0
    %270 = vmatpush1.msra.mxu0 %v220
    %271 = vmatprep.subr.mxu0 0.0
    %272 = vmatpush1.msra.mxu0 %v221
    %273 = vmatprep.subr.mxu0 0.0
    %274 = vmatpush1.msra.mxu0 %v222
    %275 = vmatprep.subr.mxu0 0.0
    %276 = vmatpush1.msra.mxu0 %v223
    %277 = vmatprep.subr.mxu0 0.0
    %278 = vmatpush1.msra.mxu0 %v224
    %279 = vmatprep.subr.mxu0 0.0
    %280 = vmatpush1.msra.mxu0 %v225
    %281 = vmatprep.subr.mxu0 0.0
    %282 = vmatpush1.msra.mxu0 %v226
    %283 = vmatprep.subr.mxu0 0.0
    %284 = vmatpush1.msra.mxu0 %v227
    %285 = vmatprep.subr.mxu0 0.0
    %286 = vmatpush1.msra.mxu0 0.0
    %287 = vmatprep.subr.mxu0 0.0
    %288 = vmatpush1.msra.mxu0 0.0
    %289 = vmatprep.subr.mxu0 0.0
    %290 = vmatpush1.msra.mxu0 0.0
    %291 = vmatprep.subr.mxu0 0.0
    %292 = vmatpush1.msra.mxu0 0.0
    %293 = vmatprep.subr.mxu0 0.0
    %294 = vmatpush1.msra.mxu0 0.0
    %295 = vmatprep.subr.mxu0 0.0
    %296 = vmatpush1.msra.mxu0 0.0
    %297 = vmatprep.subr.mxu0 0.0
    %298 = vmatpush1.msra.mxu0 0.0
    %299 = vmatprep.subr.mxu0 0.0
    %300 = vmatpush1.msra.mxu0 0.0
    %301 = vmatprep.subr.mxu0 0.0
    %302 = vmatpush1.msra.mxu0 0.0
    %303 = vmatprep.subr.mxu0 0.0
    %304 = vmatpush1.msra.mxu0 0.0
    %305 = vmatprep.subr.mxu0 0.0
    %306 = vmatpush1.msra.mxu0 0.0
    %307 = vmatprep.subr.mxu0 0.0
    %308 = vmatpush1.msra.mxu0 0.0
    %309 = vmatprep.subr.mxu0 0.0
    %310 = vmatpush1.msra.mxu0 0.0
    %311 = vmatprep.subr.mxu0 0.0
    %312 = vmatpush1.msra.mxu0 0.0
    %313 = vmatprep.subr.mxu0 0.0
    %314 = vmatpush1.msra.mxu0 0.0
    %315 = vmatprep.subr.mxu0 0.0
    %316 = vmatpush1.msra.mxu0 0.0
    %317 = vmatprep.subr.mxu0 0.0
    %318 = vmatpush1.msra.mxu0 0.0
    %319 = vmatprep.subr.mxu0 0.0
    %320 = vmatpush1.msra.mxu0 0.0
    %321 = vmatprep.subr.mxu0 0.0
    %322 = vmatpush1.msra.mxu0 0.0
    %323 = vmatprep.subr.mxu0 0.0
    %324 = vmatpush1.msra.mxu0 0.0
    %325 = vmatprep.subr.mxu0 0.0
    %326 = vmatpush1.msra.mxu0 0.0
    %327 = vmatprep.subr.mxu0 0.0
    %328 = vmatpush1.msra.mxu0 0.0
    %329 = vmatprep.subr.mxu0 0.0
    %330 = vmatpush1.msra.mxu0 0.0
    %331 = vmatprep.subr.mxu0 0.0
    %332 = vmatpush1.msra.mxu0 0.0
    %333 = vmatprep.mubr.f32.mxu0 0.0
    %334 = vmatmul.mubr.f32.gmra.mrb[0].mxu0 %v258
    %v335 = vpop.f32.mrb[0].mxu0
    %v336 = vadd.f32 %v239, %v335
    %v337 = vpop.f32.mrb[0].mxu0
    %338 = vmatprep.mubr.f32.mxu0 0.0
    %339 = vmatmul.mubr.f32.gmra.mrb[0].mxu0 %v261
    %v340 = vpop.f32.mrb[0].mxu0
    %v341 = vadd.f32 %v244, %v340
    %v342 = vpop.f32.mrb[0].mxu0
    %343 = vmatprep.mubr.f32.mxu0 0.0
    %344 = vmatmul.mubr.f32.gmra.mrb[0].mxu0 %v264
    %v345 = vpop.f32.mrb[0].mxu0
    %v346 = vadd.f32 %v249, %v345
    %v347 = vpop.f32.mrb[0].mxu0
    %348 = vmatprep.mubr.f32.mxu0 0.0
    %349 = vmatmul.mubr.f32.gmra.mrb[0].mxu0 %v267
    %v350 = vpop.f32.mrb[0].mxu0
    %v351 = vadd.f32 %v254, %v350
    %v352 = vpop.f32.mrb[0].mxu0
    %353 = vdwg.mxu0
    %v354 = vmax.f32 %v336, 0.0
    %v355 = vmax.f32 %v341, 0.0
    %v356 = vmax.f32 %v346, 0.0
    %v357 = vmax.f32 %v351, 0.0
    %v358 = vld [vmem:[%s5] sm:$0xff]
    %v359 = vld [vmem:[%s5 + $0x8] sm:$0xff]
    %v360 = vld [vmem:[%s5 + $0x10] sm:$0xff]
    %v361 = vld [vmem:[%s5 + $0x18] sm:$0xff]
    %363 = vset.pattern.permute.xlu0 0
    %364 = vperm.xlu0 %363, %v358
    %v365 = vpop.permute.xlu0 %364
    %368 = vset.pattern.permute.xlu0 0
    %369 = vperm.xlu0 %368, %v359
    %v370 = vpop.permute.xlu0 %369
    %373 = vset.pattern.permute.xlu0 0
    %374 = vperm.xlu0 %373, %v360
    %v375 = vpop.permute.xlu0 %374
    %378 = vset.pattern.permute.xlu0 0
    %379 = vperm.xlu0 %378, %v361
    %v380 = vpop.permute.xlu0 %379
    %v382 = vmul.f32 %v354, %v365
    %v383 = vmul.f32 %v355, %v370
    %v384 = vmul.f32 %v356, %v375
    %v385 = vmul.f32 %v357, %v380
    %v386 = vadd.f32 %v382, %v383
    %v387 = vadd.f32 %v386, %v384
    %v388 = vadd.f32 %v387, %v385
    %v389 = vrot.slane %v388, 4
    %v390 = vadd.f32 %v388, %v389
    %v391 = vrot.slane %v390, 2
    %v392 = vadd.f32 %v390, %v391
    %v393 = vrot.slane %v392, 1
    %v394 = vadd.f32 %v392, %v393
    %s395 = sld [smem:[#allocation2]]
    %v396 = vstv %s395
    %v397 = vadd.f32 %v394, %v396
    %v398 = vxor.u32 %v397, 2147483648
    %v399 = vmul.f32 %v398, 1.442695
    %v400 = vpow.pop %v399
    %v401 = vadd.f32 %v400, 1.0
    %v402 = vrcp.pop %v401
    %v403 = vmul.f32 1.0, %v402
    %404 = vst [vmem:[#allocation3] sm:$0x1] %v403
    // Predicated region
    $region30: #{tpu_custom_call.1} parent=1 // pred_check
      _
    $region31: #{tpu_custom_call.1} parent=1 // pred_check_branch
      %406 = sbr.rel (0) target = $region33
    $region32: #{tpu_custom_call.1} parent=1 // pred_region
      %s408 = ssub.s32 16, 16
      %409 = vsyncadd [#allocation4], %s408
      %s411 = sshll.u32 [#allocation3], 4
      %s412 = int_to_ptr.vmem [resolvable:$true] %s411
      %414 = dma.vmem_to_hbm [thread:$0]  %s412, 16, %s7, [#allocation4]
    $region33: #{tpu_custom_call.1} parent=1 // pred_fallthru
      _
    // Predicated region
    $region34: #{tpu_custom_call.1} parent=1 // pred_check
      _
    $region35: #{tpu_custom_call.1} parent=1 // pred_check_branch
      %416 = sbr.rel (0) target = $region37
    $region36: #{tpu_custom_call.1} parent=1 // pred_region
      %417 = dma.done [#allocation4], 16
    $region37: #{tpu_custom_call.1} parent=1 // pred_fallthru
      _
    %418 = vsyncpa [#allocation4], 1

</llo_original>
